<compile_context>
chip_gen: v7x
topology: tpu7x:2x2x1
jax: 0.10.0
libtpu: 0.0.40
codegen_flags: <defaults>
</compile_context>

<pallas_src>
import functools

import jax
import jax.numpy as jnp
from jax.experimental import pallas as pl
from jax.experimental.pallas import tpu as pltpu


# -----------------------------------------------------------------------------
# Config (stands in for the `config` dict passed to Generator.__init__)
# -----------------------------------------------------------------------------
CONFIG = {
    "g_fc_layers_num": 3,
    "batch_norm": True,
    "g_activation": 3,          # 3 -> LeakyReLU(g_relu_slope), 0 -> ReLU
    "g_relu_slope": 0.2,
    "g_fc_out_features_0": 64,
    "g_fc_out_features_1": 48,
}
NORMAL_DIM = 22
LATENT_DIM = 32
LABEL_DIM = 10
BN_EPS = 1e-5   # nn.BatchNorm1d default
PAD = 128       # lane-dense feature width for all activations inside the kernel


# -----------------------------------------------------------------------------
# Fused generator kernel: all FC layers in one kernel body.
#   layer 0 : h = x @ W0x + y @ W0y + b0        (replaces torch.cat(dim=1))
#   layer i : h = h @ Wi  + bi
#   BN (training-mode, batch stats, biased var) on all but the last layer,
#   LeakyReLU(slope) after every layer (slope=0 -> ReLU).
# -----------------------------------------------------------------------------
def _leaky_relu(h, slope):
    return jnp.where(h > 0, h, slope * h)


def _batch_norm(h, gamma, beta):
    # Single centering pass: reuse (h - mean) for both variance and normalize.
    mean = jnp.mean(h, axis=0, keepdims=True)
    c = h - mean
    var = jnp.mean(c * c, axis=0, keepdims=True)
    return c * jax.lax.rsqrt(var + BN_EPS) * gamma + beta


def _generator_kernel(*refs, n_layers, use_bn, slope):
    out_ref = refs[-1]
    it = iter(refs[:-1])
    x = next(it)[...]
    y = next(it)[...]

    h = None
    for i in range(n_layers):
        if i == 0:
            w0x = next(it)[...]
            w0y = next(it)[...]
            b0 = next(it)[...]
            h = (jnp.dot(x, w0x, preferred_element_type=jnp.float32)
                 + jnp.dot(y, w0y, preferred_element_type=jnp.float32)
                 + b0)
        else:
            w = next(it)[...]
            b = next(it)[...]
            h = jnp.dot(h, w, preferred_element_type=jnp.float32) + b
        if use_bn and i != n_layers - 1:
            gamma = next(it)[...]
            beta = next(it)[...]
            h = _batch_norm(h, gamma, beta)
        h = _leaky_relu(h, slope)

    out_ref[...] = h.astype(out_ref.dtype)


# -----------------------------------------------------------------------------
# Parameter init (unpadded, matches PyTorch Linear / BatchNorm1d defaults)
# -----------------------------------------------------------------------------
def init_generator_params(key, normal_dim, latent_dim, config, label_dim=10):
    n_layers = config["g_fc_layers_num"]
    in_features = normal_dim + label_dim
    out_sizes = [config[f"g_fc_out_features_{i}"] for i in range(n_layers - 1)]
    out_sizes.append(latent_dim)

    params = []
    for f_out in out_sizes:
        key, kw, kb = jax.random.split(key, 3)
        bound = float(in_features) ** -0.5       # PyTorch Linear default bound
        w = jax.random.uniform(kw, (in_features, f_out), jnp.float32, -bound, bound)
        b = jax.random.uniform(kb, (1, f_out), jnp.float32, -bound, bound)
        gamma = jnp.ones((1, f_out), jnp.float32)   # BatchNorm1d init
        beta = jnp.zeros((1, f_out), jnp.float32)
        params.append((w, b, gamma, beta))
        in_features = f_out
    return params


def _pad2(a, rows, cols):
    r, c = a.shape
    return jnp.pad(a, ((0, rows - r), (0, cols - c)))


def pad_generator_params(params, normal_dim, label_dim, config, pad=PAD):
    """Zero-pad every feature axis to `pad` lanes ONCE, and flatten into the
    kernel argument order:
      (w0x, w0y, b0 [, g0, be0], w1, b1 [, g1, be1], ..., wL, bL)
    Padded output columns are exactly zero at every layer (zero weight cols,
    zero bias/beta), so BN/activation leave them at zero and they are simply
    sliced off at the end."""
    n_layers = config["g_fc_layers_num"]
    use_bn = bool(config["batch_norm"])
    flat = []
    for i, (w, b, gamma, beta) in enumerate(params):
        f_in, _ = w.shape
        if i == 0:
            # Split the first-layer weight into its x-rows and y-rows.
            flat.append(_pad2(w[:normal_dim], normal_dim, pad))
            flat.append(_pad2(w[normal_dim:], label_dim, pad))
        else:
            flat.append(_pad2(w, pad, pad))
        flat.append(_pad2(b, 1, pad))
        if use_bn and i != n_layers - 1:
            flat.append(_pad2(gamma, 1, pad))
            flat.append(_pad2(beta, 1, pad))
    return flat


# -----------------------------------------------------------------------------
# Forward: single fused pallas_call
# -----------------------------------------------------------------------------
def generator_forward(padded_flat, x, y, config, latent_dim):
    n_layers = config["g_fc_layers_num"]
    use_bn = bool(config["batch_norm"])
    act = config["g_activation"]
    if act == 3:
        slope = float(config["g_relu_slope"])
    elif act == 0:
        slope = 0.0
    else:
        # TODO(synk): Sigmoid (1) / Softmax (2) activation variants are not
        # wired into the fused kernel.
        raise NotImplementedError("only ReLU / LeakyReLU activations are fused")

    B = x.shape[0]
    kernel = functools.partial(_generator_kernel, n_layers=n_layers,
                               use_bn=use_bn, slope=slope)
    vmem = pl.BlockSpec(memory_space=pltpu.MemorySpace.VMEM)

    out_padded = pl.pallas_call(
        kernel,
        out_shape=jax.ShapeDtypeStruct((B, PAD), jnp.float32),
        in_specs=[vmem] * (2 + len(padded_flat)),
        out_specs=vmem,
    )(x, y, *padded_flat)
    return out_padded[:, :latent_dim]


# -----------------------------------------------------------------------------
# Pure-JAX reference (unpadded) for sanity checking
# -----------------------------------------------------------------------------
def generator_forward_ref(params, x, y, config):
    n_layers = config["g_fc_layers_num"]
    slope = float(config["g_relu_slope"]) if config["g_activation"] == 3 else 0.0
    xy = jnp.concatenate([x, y], axis=1)
    for i in range(n_layers):
        w, b, gamma, beta = params[i]
        h = xy @ w + b
        if config["batch_norm"] and i != n_layers - 1:
            mean = jnp.mean(h, axis=0, keepdims=True)
            var = jnp.mean(jnp.square(h - mean), axis=0, keepdims=True)
            h = (h - mean) * jax.lax.rsqrt(var + BN_EPS) * gamma + beta
        xy = jnp.where(h > 0, h, slope * h)
    return xy


if __name__ == "__main__":
    key = jax.random.PRNGKey(0)
    k_params, k_x, k_y = jax.random.split(key, 3)

    B = 8  # matches one sublane tile; BN stats are exact over the whole batch
    params = init_generator_params(k_params, NORMAL_DIM, LATENT_DIM, CONFIG,
                                   label_dim=LABEL_DIM)
    flat = pad_generator_params(params, NORMAL_DIM, LABEL_DIM, CONFIG)

    x = jax.random.normal(k_x, (B, NORMAL_DIM), jnp.float32)      # noise
    y_idx = jax.random.randint(k_y, (B,), 0, LABEL_DIM)
    y = jax.nn.one_hot(y_idx, LABEL_DIM, dtype=jnp.float32)       # labels

    out = generator_forward(flat, x, y, CONFIG, LATENT_DIM)
    out = jax.block_until_ready(out)

    ref = generator_forward_ref(params, x, y, CONFIG)
    assert out.shape == (B, LATENT_DIM), out.shape
    assert jnp.allclose(out, ref, atol=1e-4, rtol=1e-4), "mismatch vs reference"

    print("KERNEL_OK")
</pallas_src>

<mosaic_0001>
module attributes {stable_mosaic.version = 11 : i64} {
  func.func @_generator_kernel(%arg0: memref<8x22xf32, #tpu.memory_space<vmem>>, %arg1: memref<8x10xf32, #tpu.memory_space<vmem>>, %arg2: memref<22x128xf32, #tpu.memory_space<vmem>>, %arg3: memref<10x128xf32, #tpu.memory_space<vmem>>, %arg4: memref<1x128xf32, #tpu.memory_space<vmem>>, %arg5: memref<1x128xf32, #tpu.memory_space<vmem>>, %arg6: memref<1x128xf32, #tpu.memory_space<vmem>>, %arg7: memref<128x128xf32, #tpu.memory_space<vmem>>, %arg8: memref<1x128xf32, #tpu.memory_space<vmem>>, %arg9: memref<1x128xf32, #tpu.memory_space<vmem>>, %arg10: memref<1x128xf32, #tpu.memory_space<vmem>>, %arg11: memref<128x128xf32, #tpu.memory_space<vmem>>, %arg12: memref<1x128xf32, #tpu.memory_space<vmem>>, %arg13: memref<8x128xf32, #tpu.memory_space<vmem>>) attributes {dimension_semantics = [], scalar_prefetch = 0 : i64, scratch_operands = 0 : i64, tpu.core_type = #tpu.core_type<tc>} {
    %c0 = arith.constant 0 : index
    %c0_0 = arith.constant 0 : index
    %0 = vector.load %arg0[%c0, %c0_0] : memref<8x22xf32, #tpu.memory_space<vmem>>, vector<8x22xf32>
    %c0_1 = arith.constant 0 : index
    %c0_2 = arith.constant 0 : index
    %1 = vector.load %arg1[%c0_1, %c0_2] : memref<8x10xf32, #tpu.memory_space<vmem>>, vector<8x10xf32>
    %c0_3 = arith.constant 0 : index
    %c0_4 = arith.constant 0 : index
    %2 = vector.load %arg2[%c0_3, %c0_4] : memref<22x128xf32, #tpu.memory_space<vmem>>, vector<22x128xf32>
    %c0_5 = arith.constant 0 : index
    %c0_6 = arith.constant 0 : index
    %3 = vector.load %arg3[%c0_5, %c0_6] : memref<10x128xf32, #tpu.memory_space<vmem>>, vector<10x128xf32>
    %c0_7 = arith.constant 0 : index
    %c0_8 = arith.constant 0 : index
    %4 = vector.load %arg4[%c0_7, %c0_8] : memref<1x128xf32, #tpu.memory_space<vmem>>, vector<1x128xf32>
    %cst = arith.constant dense<0.000000e+00> : vector<8x128xf32>
    %5 = tpu.matmul %0, %2, %cst {dimension_numbers = #tpu.dot_dimension_numbers<[1], [0], [0], [1], [0, 0, 1, 1], [], []>} : vector<8x22xf32>, vector<22x128xf32>, vector<8x128xf32> -> vector<8x128xf32>
    %cst_9 = arith.constant dense<0.000000e+00> : vector<8x128xf32>
    %6 = tpu.matmul %1, %3, %cst_9 {dimension_numbers = #tpu.dot_dimension_numbers<[1], [0], [0], [1], [0, 0, 1, 1], [], []>} : vector<8x10xf32>, vector<10x128xf32>, vector<8x128xf32> -> vector<8x128xf32>
    %7 = arith.addf %5, %6 : vector<8x128xf32>
    %8 = vector.broadcast %4 : vector<1x128xf32> to vector<8x128xf32>
    %9 = arith.addf %7, %8 : vector<8x128xf32>
    %c0_10 = arith.constant 0 : index
    %c0_11 = arith.constant 0 : index
    %10 = vector.load %arg5[%c0_10, %c0_11] : memref<1x128xf32, #tpu.memory_space<vmem>>, vector<1x128xf32>
    %c0_12 = arith.constant 0 : index
    %c0_13 = arith.constant 0 : index
    %11 = vector.load %arg6[%c0_12, %c0_13] : memref<1x128xf32, #tpu.memory_space<vmem>>, vector<1x128xf32>
    %cst_14 = arith.constant dense<0.000000e+00> : vector<128xf32>
    %12 = vector.multi_reduction <add>, %9, %cst_14 [0] : vector<8x128xf32> to vector<128xf32>
    %13 = vector.shape_cast %12 : vector<128xf32> to vector<1x128xf32>
    %cst_15 = arith.constant 8.000000e+00 : f32
    %14 = vector.broadcast %cst_15 : f32 to vector<1x128xf32>
    %15 = arith.divf %13, %14 : vector<1x128xf32>
    %16 = vector.broadcast %15 : vector<1x128xf32> to vector<8x128xf32>
    %17 = arith.subf %9, %16 : vector<8x128xf32>
    %18 = arith.mulf %17, %17 : vector<8x128xf32>
    %cst_16 = arith.constant dense<0.000000e+00> : vector<128xf32>
    %19 = vector.multi_reduction <add>, %18, %cst_16 [0] : vector<8x128xf32> to vector<128xf32>
    %20 = vector.shape_cast %19 : vector<128xf32> to vector<1x128xf32>
    %cst_17 = arith.constant 8.000000e+00 : f32
    %21 = vector.broadcast %cst_17 : f32 to vector<1x128xf32>
    %22 = arith.divf %20, %21 : vector<1x128xf32>
    %cst_18 = arith.constant 9.99999974E-6 : f32
    %23 = vector.broadcast %cst_18 : f32 to vector<1x128xf32>
    %24 = arith.addf %22, %23 : vector<1x128xf32>
    %25 = math.rsqrt %24 : vector<1x128xf32>
    %26 = vector.broadcast %25 : vector<1x128xf32> to vector<8x128xf32>
    %27 = arith.mulf %17, %26 : vector<8x128xf32>
    %28 = vector.broadcast %10 : vector<1x128xf32> to vector<8x128xf32>
    %29 = arith.mulf %27, %28 : vector<8x128xf32>
    %30 = vector.broadcast %11 : vector<1x128xf32> to vector<8x128xf32>
    %31 = arith.addf %29, %30 : vector<8x128xf32>
    %cst_19 = arith.constant 0.000000e+00 : f32
    %32 = vector.broadcast %cst_19 : f32 to vector<8x128xf32>
    %33 = arith.cmpf ogt, %31, %32 : vector<8x128xf32>
    %cst_20 = arith.constant 2.000000e-01 : f32
    %34 = vector.broadcast %cst_20 : f32 to vector<8x128xf32>
    %35 = arith.mulf %34, %31 : vector<8x128xf32>
    %36 = arith.select %33, %31, %35 : vector<8x128xi1>, vector<8x128xf32>
    %c0_21 = arith.constant 0 : index
    %c0_22 = arith.constant 0 : index
    %37 = vector.load %arg7[%c0_21, %c0_22] : memref<128x128xf32, #tpu.memory_space<vmem>>, vector<128x128xf32>
    %c0_23 = arith.constant 0 : index
    %c0_24 = arith.constant 0 : index
    %38 = vector.load %arg8[%c0_23, %c0_24] : memref<1x128xf32, #tpu.memory_space<vmem>>, vector<1x128xf32>
    %cst_25 = arith.constant dense<0.000000e+00> : vector<8x128xf32>
    %39 = tpu.matmul %36, %37, %cst_25 {dimension_numbers = #tpu.dot_dimension_numbers<[1], [0], [0], [1], [0, 0, 1, 1], [], []>} : vector<8x128xf32>, vector<128x128xf32>, vector<8x128xf32> -> vector<8x128xf32>
    %40 = vector.broadcast %38 : vector<1x128xf32> to vector<8x128xf32>
    %41 = arith.addf %39, %40 : vector<8x128xf32>
    %c0_26 = arith.constant 0 : index
    %c0_27 = arith.constant 0 : index
    %42 = vector.load %arg9[%c0_26, %c0_27] : memref<1x128xf32, #tpu.memory_space<vmem>>, vector<1x128xf32>
    %c0_28 = arith.constant 0 : index
    %c0_29 = arith.constant 0 : index
    %43 = vector.load %arg10[%c0_28, %c0_29] : memref<1x128xf32, #tpu.memory_space<vmem>>, vector<1x128xf32>
    %cst_30 = arith.constant dense<0.000000e+00> : vector<128xf32>
    %44 = vector.multi_reduction <add>, %41, %cst_30 [0] : vector<8x128xf32> to vector<128xf32>
    %45 = vector.shape_cast %44 : vector<128xf32> to vector<1x128xf32>
    %cst_31 = arith.constant 8.000000e+00 : f32
    %46 = vector.broadcast %cst_31 : f32 to vector<1x128xf32>
    %47 = arith.divf %45, %46 : vector<1x128xf32>
    %48 = vector.broadcast %47 : vector<1x128xf32> to vector<8x128xf32>
    %49 = arith.subf %41, %48 : vector<8x128xf32>
    %50 = arith.mulf %49, %49 : vector<8x128xf32>
    %cst_32 = arith.constant dense<0.000000e+00> : vector<128xf32>
    %51 = vector.multi_reduction <add>, %50, %cst_32 [0] : vector<8x128xf32> to vector<128xf32>
    %52 = vector.shape_cast %51 : vector<128xf32> to vector<1x128xf32>
    %cst_33 = arith.constant 8.000000e+00 : f32
    %53 = vector.broadcast %cst_33 : f32 to vector<1x128xf32>
    %54 = arith.divf %52, %53 : vector<1x128xf32>
    %cst_34 = arith.constant 9.99999974E-6 : f32
    %55 = vector.broadcast %cst_34 : f32 to vector<1x128xf32>
    %56 = arith.addf %54, %55 : vector<1x128xf32>
    %57 = math.rsqrt %56 : vector<1x128xf32>
    %58 = vector.broadcast %57 : vector<1x128xf32> to vector<8x128xf32>
    %59 = arith.mulf %49, %58 : vector<8x128xf32>
    %60 = vector.broadcast %42 : vector<1x128xf32> to vector<8x128xf32>
    %61 = arith.mulf %59, %60 : vector<8x128xf32>
    %62 = vector.broadcast %43 : vector<1x128xf32> to vector<8x128xf32>
    %63 = arith.addf %61, %62 : vector<8x128xf32>
    %cst_35 = arith.constant 0.000000e+00 : f32
    %64 = vector.broadcast %cst_35 : f32 to vector<8x128xf32>
    %65 = arith.cmpf ogt, %63, %64 : vector<8x128xf32>
    %cst_36 = arith.constant 2.000000e-01 : f32
    %66 = vector.broadcast %cst_36 : f32 to vector<8x128xf32>
    %67 = arith.mulf %66, %63 : vector<8x128xf32>
    %68 = arith.select %65, %63, %67 : vector<8x128xi1>, vector<8x128xf32>
    %c0_37 = arith.constant 0 : index
    %c0_38 = arith.constant 0 : index
    %69 = vector.load %arg11[%c0_37, %c0_38] : memref<128x128xf32, #tpu.memory_space<vmem>>, vector<128x128xf32>
    %c0_39 = arith.constant 0 : index
    %c0_40 = arith.constant 0 : index
    %70 = vector.load %arg12[%c0_39, %c0_40] : memref<1x128xf32, #tpu.memory_space<vmem>>, vector<1x128xf32>
    %cst_41 = arith.constant dense<0.000000e+00> : vector<8x128xf32>
    %71 = tpu.matmul %68, %69, %cst_41 {dimension_numbers = #tpu.dot_dimension_numbers<[1], [0], [0], [1], [0, 0, 1, 1], [], []>} : vector<8x128xf32>, vector<128x128xf32>, vector<8x128xf32> -> vector<8x128xf32>
    %72 = vector.broadcast %70 : vector<1x128xf32> to vector<8x128xf32>
    %73 = arith.addf %71, %72 : vector<8x128xf32>
    %cst_42 = arith.constant 0.000000e+00 : f32
    %74 = vector.broadcast %cst_42 : f32 to vector<8x128xf32>
    %75 = arith.cmpf ogt, %73, %74 : vector<8x128xf32>
    %cst_43 = arith.constant 2.000000e-01 : f32
    %76 = vector.broadcast %cst_43 : f32 to vector<8x128xf32>
    %77 = arith.mulf %76, %73 : vector<8x128xf32>
    %78 = arith.select %75, %73, %77 : vector<8x128xi1>, vector<8x128xf32>
    %c0_44 = arith.constant 0 : index
    %c0_45 = arith.constant 0 : index
    %79 = vector.load %arg13[%c0_44, %c0_45] : memref<8x128xf32, #tpu.memory_space<vmem>>, vector<8x128xf32>
    tpu.vector_store %arg13[%c0_44, %c0_45], %78 {strides = array<i32>} : memref<8x128xf32, #tpu.memory_space<vmem>>, vector<8x128xf32>,
    return
  }
}

</mosaic_0001>

<llo_original>
// kernel: tpu_custom_call.1
$region0: #{tpu_custom_call.1}
  #allocation0 [shape = 'u32[]', space=smem, size = 0x4, offset = 0x4, fixed_abs, tag = 'smem constant byte address 0x4 - core index']
  #allocation1 [shape = 'u32[144,128]{1,0:T(1,128)}', space=vmem, size = 0x12000, scoped, tag = 'internal scratch']
  %s0 = inlined_call_operand.hbm [shape: f32[8,22], index: 0, kind: input, shape index: {}]
  %s1 = inlined_call_operand.hbm [shape: f32[8,10], index: 1, kind: input, shape index: {}]
  %s2 = inlined_call_operand.hbm [shape: f32[22,128], index: 2, kind: input, shape index: {}]
  %s3 = inlined_call_operand.hbm [shape: f32[10,128], index: 3, kind: input, shape index: {}]
  %s4 = inlined_call_operand.vmem [shape: f32[1,128], index: 4, kind: input, shape index: {}]
  %s5 = inlined_call_operand.vmem [shape: f32[1,128], index: 5, kind: input, shape index: {}]
  %s6 = inlined_call_operand.vmem [shape: f32[1,128], index: 6, kind: input, shape index: {}]
  %s7 = inlined_call_operand.hbm [shape: f32[128,128], index: 7, kind: input, shape index: {}]
  %s8 = inlined_call_operand.vmem [shape: f32[1,128], index: 8, kind: input, shape index: {}]
  %s9 = inlined_call_operand.vmem [shape: f32[1,128], index: 9, kind: input, shape index: {}]
  %s10 = inlined_call_operand.vmem [shape: f32[1,128], index: 10, kind: input, shape index: {}]
  %s11 = inlined_call_operand.hbm [shape: f32[128,128], index: 11, kind: input, shape index: {}]
  %s12 = inlined_call_operand.vmem [shape: f32[1,128], index: 12, kind: input, shape index: {}]
  %s13 = inlined_call_operand.hbm [shape: f32[8,128], index: 13, kind: output, shape index: {}]
  %s14 = sld [smem:[#allocation0]]
  $region86: #{tpu_custom_call.1} parent=0
    _
  %s16 = ssub.s32 1, %s14
  %s17 = scalar_select 0, %s16, %s14
  $region1: #{tpu_custom_call.1} parent=0
    #allocation2 [shape = 'u8[4096]{0}', space=vmem, size = 0x1000, scoped, tag = 'input window, operand 0, single buffered']
    #allocation3 [shape = 's32[1]{0}', space=sflag, size = 0x4, scoped, tag = 'scoped memory for tpu_custom_call.1']
    #allocation4 [shape = 's32[1]{0}', space=sflag, size = 0x4, scoped, tag = 'scoped memory for tpu_custom_call.1']
    #allocation5 [shape = 'u8[4096]{0}', space=vmem, size = 0x1000, scoped, tag = 'input window, operand 1, single buffered']
    #allocation6 [shape = 's32[1]{0}', space=sflag, size = 0x4, scoped, tag = 'scoped memory for tpu_custom_call.1']
    #allocation7 [shape = 'u8[12288]{0}', space=vmem, size = 0x3000, scoped, tag = 'input window, operand 2, single buffered']
    #allocation8 [shape = 'u8[8192]{0}', space=vmem, size = 0x2000, scoped, tag = 'input window, operand 3, single buffered']
    #allocation9 [shape = 's32[1]{0}', space=sflag, size = 0x4, scoped, tag = 'scoped memory for tpu_custom_call.1']
    #allocation10 [shape = 'u8[65536]{0}', space=vmem, size = 0x10000, scoped, tag = 'input window, operand 7, single buffered']
    #allocation11 [shape = 'u8[65536]{0}', space=vmem, size = 0x10000, scoped, tag = 'input window, operand 11, single buffered']
    #allocation12 [shape = 's32[1]{0}', space=sflag, size = 0x4, scoped, tag = 'scoped memory for tpu_custom_call.1']
    #allocation13 [shape = 'u8[4096]{0}', space=vmem, size = 0x1000, scoped, tag = 'output window, operand 0, single buffered']
    %18 = vsyncpa [#allocation3], 0
    %19 = vsyncpa [#allocation6], 0
    %20 = vsyncpa [#allocation9], 0
    %21 = vsyncpa [#allocation12], 0
    %22 = vsyncpa [#allocation4], 0
    // Predicated region
    $region2: #{tpu_custom_call.1} parent=1 // pred_check
      _
    $region3: #{tpu_custom_call.1} parent=1 // pred_check_branch
      %24 = sbr.rel (0) target = $region5
    $region4: #{tpu_custom_call.1} parent=1 // pred_region
      %s26 = ssub.s32 128, 128
      %27 = vsyncadd [#allocation3], %s26
      %s29 = sshll.u32 [#allocation2], 4
      %s30 = int_to_ptr.vmem [resolvable:$true] %s29
      %32 = dma.hbm_to_vmem [thread:$0]  %s0, 128, %s30, [#allocation3]
    $region5: #{tpu_custom_call.1} parent=1 // pred_fallthru
      _
    // Predicated region
    $region6: #{tpu_custom_call.1} parent=1 // pred_check
      _
    $region7: #{tpu_custom_call.1} parent=1 // pred_check_branch
      %34 = sbr.rel (0) target = $region9
    $region8: #{tpu_custom_call.1} parent=1 // pred_region
      %s36 = ssub.s32 128, 128
      %37 = vsyncadd [#allocation6], %s36
      %s39 = sshll.u32 [#allocation5], 4
      %s40 = int_to_ptr.vmem [resolvable:$true] %s39
      %42 = dma.hbm_to_vmem [thread:$0]  %s1, 128, %s40, [#allocation6]
    $region9: #{tpu_custom_call.1} parent=1 // pred_fallthru
      _
    // Predicated region
    $region10: #{tpu_custom_call.1} parent=1 // pred_check
      _
    $region11: #{tpu_custom_call.1} parent=1 // pred_check_branch
      %44 = sbr.rel (0) target = $region13
    $region12: #{tpu_custom_call.1} parent=1 // pred_region
      %s46 = ssub.s32 384, 384
      %47 = vsyncadd [#allocation6], %s46
      %s48 = sshll.u32 [#allocation7], 4
      %s49 = int_to_ptr.vmem [resolvable:$true] %s48
      %54 = dma.hbm_to_vmem [thread:$0]  %s2, 384, %s49, [#allocation6], 128, 128, 8
    $region13: #{tpu_custom_call.1} parent=1 // pred_fallthru
      _
    // Predicated region
    $region14: #{tpu_custom_call.1} parent=1 // pred_check
      _
    $region15: #{tpu_custom_call.1} parent=1 // pred_check_branch
      %56 = sbr.rel (0) target = $region17
    $region16: #{tpu_custom_call.1} parent=1 // pred_region
      %s58 = ssub.s32 256, 256
      %59 = vsyncadd [#allocation9], %s58
      %s60 = sshll.u32 [#allocation8], 4
      %s61 = int_to_ptr.vmem [resolvable:$true] %s60
      %66 = dma.hbm_to_vmem [thread:$0]  %s3, 256, %s61, [#allocation9], 128, 128, 8
    $region17: #{tpu_custom_call.1} parent=1 // pred_fallthru
      _
    // Predicated region
    $region18: #{tpu_custom_call.1} parent=1 // pred_check
      _
    $region19: #{tpu_custom_call.1} parent=1 // pred_check_branch
      %68 = sbr.rel (0) target = $region21
    $region20: #{tpu_custom_call.1} parent=1 // pred_region
      _
    $region21: #{tpu_custom_call.1} parent=1 // pred_fallthru
      _
    // Predicated region
    $region22: #{tpu_custom_call.1} parent=1 // pred_check
      _
    $region23: #{tpu_custom_call.1} parent=1 // pred_check_branch
      %70 = sbr.rel (0) target = $region25
    $region24: #{tpu_custom_call.1} parent=1 // pred_region
      _
    $region25: #{tpu_custom_call.1} parent=1 // pred_fallthru
      _
    // Predicated region
    $region26: #{tpu_custom_call.1} parent=1 // pred_check
      _
    $region27: #{tpu_custom_call.1} parent=1 // pred_check_branch
      %72 = sbr.rel (0) target = $region29
    $region28: #{tpu_custom_call.1} parent=1 // pred_region
      _
    $region29: #{tpu_custom_call.1} parent=1 // pred_fallthru
      _
    // Predicated region
    $region30: #{tpu_custom_call.1} parent=1 // pred_check
      _
    $region31: #{tpu_custom_call.1} parent=1 // pred_check_branch
      %74 = sbr.rel (0) target = $region33
    $region32: #{tpu_custom_call.1} parent=1 // pred_region
      %s76 = ssub.s32 2048, 2048
      %77 = vsyncadd [#allocation9], %s76
      %s78 = sshll.u32 [#allocation10], 4
      %s79 = int_to_ptr.vmem [resolvable:$true] %s78
      %84 = dma.hbm_to_vmem [thread:$0]  %s7, 2048, %s79, [#allocation9], 128, 128, 8
    $region33: #{tpu_custom_call.1} parent=1 // pred_fallthru
      _
    // Predicated region
    $region34: #{tpu_custom_call.1} parent=1 // pred_check
      _
    $region35: #{tpu_custom_call.1} parent=1 // pred_check_branch
      %86 = sbr.rel (0) target = $region37
    $region36: #{tpu_custom_call.1} parent=1 // pred_region
      _
    $region37: #{tpu_custom_call.1} parent=1 // pred_fallthru
      _
    // Predicated region
    $region38: #{tpu_custom_call.1} parent=1 // pred_check
      _
    $region39: #{tpu_custom_call.1} parent=1 // pred_check_branch
      %88 = sbr.rel (0) target = $region41
    $region40: #{tpu_custom_call.1} parent=1 // pred_region
      _
    $region41: #{tpu_custom_call.1} parent=1 // pred_fallthru
      _
    // Predicated region
    $region42: #{tpu_custom_call.1} parent=1 // pred_check
      _
    $region43: #{tpu_custom_call.1} parent=1 // pred_check_branch
      %90 = sbr.rel (0) target = $region45
    $region44: #{tpu_custom_call.1} parent=1 // pred_region
      _
    $region45: #{tpu_custom_call.1} parent=1 // pred_fallthru
      _
    // Predicated region
    $region46: #{tpu_custom_call.1} parent=1 // pred_check
      _
    $region47: #{tpu_custom_call.1} parent=1 // pred_check_branch
      %92 = sbr.rel (0) target = $region49
    $region48: #{tpu_custom_call.1} parent=1 // pred_region
      %s94 = ssub.s32 2048, 2048
      %95 = vsyncadd [#allocation12], %s94
      %s96 = sshll.u32 [#allocation11], 4
      %s97 = int_to_ptr.vmem [resolvable:$true] %s96
      %102 = dma.hbm_to_vmem [thread:$0]  %s11, 2048, %s97, [#allocation12], 128, 128, 8
    $region49: #{tpu_custom_call.1} parent=1 // pred_fallthru
      _
    // Predicated region
    $region50: #{tpu_custom_call.1} parent=1 // pred_check
      _
    $region51: #{tpu_custom_call.1} parent=1 // pred_check_branch
      %104 = sbr.rel (0) target = $region53
    $region52: #{tpu_custom_call.1} parent=1 // pred_region
      _
    $region53: #{tpu_custom_call.1} parent=1 // pred_fallthru
      _
    // Predicated region
    $region54: #{tpu_custom_call.1} parent=1 // pred_check
      _
    $region55: #{tpu_custom_call.1} parent=1 // pred_check_branch
      %106 = sbr.rel (0) target = $region57
    $region56: #{tpu_custom_call.1} parent=1 // pred_region
      %107 = dma.done [#allocation3], 128
    $region57: #{tpu_custom_call.1} parent=1 // pred_fallthru
      _
    // Predicated region
    $region58: #{tpu_custom_call.1} parent=1 // pred_check
      _
    $region59: #{tpu_custom_call.1} parent=1 // pred_check_branch
      %109 = sbr.rel (0) target = $region61
    $region60: #{tpu_custom_call.1} parent=1 // pred_region
      %110 = dma.done [#allocation6], 128
    $region61: #{tpu_custom_call.1} parent=1 // pred_fallthru
      _
    // Predicated region
    $region62: #{tpu_custom_call.1} parent=1 // pred_check
      _
    $region63: #{tpu_custom_call.1} parent=1 // pred_check_branch
      %112 = sbr.rel (0) target = $region65
    $region64: #{tpu_custom_call.1} parent=1 // pred_region
      %113 = dma.done [#allocation6], 384
    $region65: #{tpu_custom_call.1} parent=1 // pred_fallthru
      _
    // Predicated region
    $region66: #{tpu_custom_call.1} parent=1 // pred_check
      _
    $region67: #{tpu_custom_call.1} parent=1 // pred_check_branch
      %115 = sbr.rel (0) target = $region69
    $region68: #{tpu_custom_call.1} parent=1 // pred_region
      %116 = dma.done [#allocation9], 256
    $region69: #{tpu_custom_call.1} parent=1 // pred_fallthru
      _
    // Predicated region
    $region70: #{tpu_custom_call.1} parent=1 // pred_check
      _
    $region71: #{tpu_custom_call.1} parent=1 // pred_check_branch
      %118 = sbr.rel (0) target = $region73
    $region72: #{tpu_custom_call.1} parent=1 // pred_region
      %119 = dma.done [#allocation9], 2048
    $region73: #{tpu_custom_call.1} parent=1 // pred_fallthru
      _
    // Predicated region
    $region74: #{tpu_custom_call.1} parent=1 // pred_check
      _
    $region75: #{tpu_custom_call.1} parent=1 // pred_check_branch
      %121 = sbr.rel (0) target = $region77
    $region76: #{tpu_custom_call.1} parent=1 // pred_region
      %122 = dma.done [#allocation12], 2048
    $region77: #{tpu_custom_call.1} parent=1 // pred_fallthru
      _
    %v123 = vld [vmem:[#allocation2] sm:$0xff]
    %v124 = vld [vmem:[#allocation5] sm:$0xff]
    %v125 = vld [vmem:[#allocation7] sm:$0xff]
    %v126 = vld [vmem:[#allocation7 + $0x8] sm:$0xff]
    %v127 = vld [vmem:[#allocation7 + $0x10] sm:$0x3f]
    %v128 = vld [vmem:[#allocation8] sm:$0xff]
    %v129 = vld [vmem:[#allocation8 + $0x8] sm:$0x3]
    %v130 = vld [vmem:[%s4] sm:$0x1]
    %vm131 = vcmask 80896
    %v133 = vsel %vm131, %v124, 0
    %vm135 = vcmask 1041408
    %v137 = vsel %vm135, %v129, 0
    %139 = vmatprep.subr.mxu0 0.0
    %140 = vmatpush1.msra.mxu0 %v128
    %141 = vmatprep.subr.mxu0 0.0
    %142 = vmatpush1.msra.mxu0 %v137
    %143 = vmatprep.subr.mxu0 0.0
    %144 = vmatpush1.msra.mxu0 0.0
    %145 = vmatprep.subr.mxu0 0.0
    %146 = vmatpush1.msra.mxu0 0.0
    %147 = vmatprep.subr.mxu0 0.0
    %148 = vmatpush1.msra.mxu0 0.0
    %149 = vmatprep.subr.mxu0 0.0
    %150 = vmatpush1.msra.mxu0 0.0
    %151 = vmatprep.subr.mxu0 0.0
    %152 = vmatpush1.msra.mxu0 0.0
    %153 = vmatprep.subr.mxu0 0.0
    %154 = vmatpush1.msra.mxu0 0.0
    %155 = vmatprep.subr.mxu0 0.0
    %156 = vmatpush1.msra.mxu0 0.0
    %157 = vmatprep.subr.mxu0 0.0
    %158 = vmatpush1.msra.mxu0 0.0
    %159 = vmatprep.subr.mxu0 0.0
    %160 = vmatpush1.msra.mxu0 0.0
    %161 = vmatprep.subr.mxu0 0.0
    %162 = vmatpush1.msra.mxu0 0.0
    %163 = vmatprep.subr.mxu0 0.0
    %164 = vmatpush1.msra.mxu0 0.0
    %165 = vmatprep.subr.mxu0 0.0
    %166 = vmatpush1.msra.mxu0 0.0
    %167 = vmatprep.subr.mxu0 0.0
    %168 = vmatpush1.msra.mxu0 0.0
    %169 = vmatprep.subr.mxu0 0.0
    %170 = vmatpush1.msra.mxu0 0.0
    %171 = vmatprep.subr.mxu0 0.0
    %172 = vmatpush1.msra.mxu0 0.0
    %173 = vmatprep.subr.mxu0 0.0
    %174 = vmatpush1.msra.mxu0 0.0
    %175 = vmatprep.subr.mxu0 0.0
    %176 = vmatpush1.msra.mxu0 0.0
    %177 = vmatprep.subr.mxu0 0.0
    %178 = vmatpush1.msra.mxu0 0.0
    %179 = vmatprep.subr.mxu0 0.0
    %180 = vmatpush1.msra.mxu0 0.0
    %181 = vmatprep.subr.mxu0 0.0
    %182 = vmatpush1.msra.mxu0 0.0
    %183 = vmatprep.subr.mxu0 0.0
    %184 = vmatpush1.msra.mxu0 0.0
    %185 = vmatprep.subr.mxu0 0.0
    %186 = vmatpush1.msra.mxu0 0.0
    %187 = vmatprep.subr.mxu0 0.0
    %188 = vmatpush1.msra.mxu0 0.0
    %189 = vmatprep.subr.mxu0 0.0
    %190 = vmatpush1.msra.mxu0 0.0
    %191 = vmatprep.subr.mxu0 0.0
    %192 = vmatpush1.msra.mxu0 0.0
    %193 = vmatprep.subr.mxu0 0.0
    %194 = vmatpush1.msra.mxu0 0.0
    %195 = vmatprep.subr.mxu0 0.0
    %196 = vmatpush1.msra.mxu0 0.0
    %197 = vmatprep.subr.mxu0 0.0
    %198 = vmatpush1.msra.mxu0 0.0
    %199 = vmatprep.subr.mxu0 0.0
    %200 = vmatpush1.msra.mxu0 0.0
    %201 = vmatprep.subr.mxu0 0.0
    %202 = vmatpush1.msra.mxu0 0.0
    %203 = vmatprep.mubr.f32.mxu0 0.0
    %204 = vmatmul.mubr.f32.gmra.mrb[0].mxu0 %v133
    %v205 = vpop.f32.mrb[0].mxu0
    %v206 = vadd.f32 0.0, %v205
    %v207 = vpop.f32.mrb[0].mxu0
    %208 = vdwg.mxu0
    %vm209 = vcmask 179200
    %v211 = vsel %vm209, %v123, 0
    %vm213 = vcmask 1045504
    %v215 = vsel %vm213, %v127, 0
    %217 = vmatprep.subr.mxu0 0.0
    %218 = vmatpush1.msra.mxu0 %v125
    %219 = vmatprep.subr.mxu0 0.0
    %220 = vmatpush1.msra.mxu0 %v126
    %221 = vmatprep.subr.mxu0 0.0
    %222 = vmatpush1.msra.mxu0 %v215
    %223 = vmatprep.subr.mxu0 0.0
    %224 = vmatpush1.msra.mxu0 0.0
    %225 = vmatprep.subr.mxu0 0.0
    %226 = vmatpush1.msra.mxu0 0.0
    %227 = vmatprep.subr.mxu0 0.0
    %228 = vmatpush1.msra.mxu0 0.0
    %229 = vmatprep.subr.mxu0 0.0
    %230 = vmatpush1.msra.mxu0 0.0
    %231 = vmatprep.subr.mxu0 0.0
    %232 = vmatpush1.msra.mxu0 0.0
    %233 = vmatprep.subr.mxu0 0.0
    %234 = vmatpush1.msra.mxu0 0.0
    %235 = vmatprep.subr.mxu0 0.0
    %236 = vmatpush1.msra.mxu0 0.0
    %237 = vmatprep.subr.mxu0 0.0
    %238 = vmatpush1.msra.mxu0 0.0
    %239 = vmatprep.subr.mxu0 0.0
    %240 = vmatpush1.msra.mxu0 0.0
    %241 = vmatprep.subr.mxu0 0.0
    %242 = vmatpush1.msra.mxu0 0.0
    %243 = vmatprep.subr.mxu0 0.0
    %244 = vmatpush1.msra.mxu0 0.0
    %245 = vmatprep.subr.mxu0 0.0
    %246 = vmatpush1.msra.mxu0 0.0
    %247 = vmatprep.subr.mxu0 0.0
    %248 = vmatpush1.msra.mxu0 0.0
    %249 = vmatprep.subr.mxu0 0.0
    %250 = vmatpush1.msra.mxu0 0.0
    %251 = vmatprep.subr.mxu0 0.0
    %252 = vmatpush1.msra.mxu0 0.0
    %253 = vmatprep.subr.mxu0 0.0
    %254 = vmatpush1.msra.mxu0 0.0
    %255 = vmatprep.subr.mxu0 0.0
    %256 = vmatpush1.msra.mxu0 0.0
    %257 = vmatprep.subr.mxu0 0.0
    %258 = vmatpush1.msra.mxu0 0.0
    %259 = vmatprep.subr.mxu0 0.0
    %260 = vmatpush1.msra.mxu0 0.0
    %261 = vmatprep.subr.mxu0 0.0
    %262 = vmatpush1.msra.mxu0 0.0
    %263 = vmatprep.subr.mxu0 0.0
    %264 = vmatpush1.msra.mxu0 0.0
    %265 = vmatprep.subr.mxu0 0.0
    %266 = vmatpush1.msra.mxu0 0.0
    %267 = vmatprep.subr.mxu0 0.0
    %268 = vmatpush1.msra.mxu0 0.0
    %269 = vmatprep.subr.mxu0 0.0
    %270 = vmatpush1.msra.mxu0 0.0
    %271 = vmatprep.subr.mxu0 0.0
    %272 = vmatpush1.msra.mxu0 0.0
    %273 = vmatprep.subr.mxu0 0.0
    %274 = vmatpush1.msra.mxu0 0.0
    %275 = vmatprep.subr.mxu0 0.0
    %276 = vmatpush1.msra.mxu0 0.0
    %277 = vmatprep.subr.mxu0 0.0
    %278 = vmatpush1.msra.mxu0 0.0
    %279 = vmatprep.subr.mxu0 0.0
    %280 = vmatpush1.msra.mxu0 0.0
    %281 = vmatprep.mubr.f32.mxu0 0.0
    %282 = vmatmul.mubr.f32.gmra.mrb[0].mxu0 %v211
    %v283 = vpop.f32.mrb[0].mxu0
    %v284 = vadd.f32 %v206, %v283
    %v285 = vpop.f32.mrb[0].mxu0
    %286 = vdwg.mxu0
    %v288 = vlaneseq
    %v289 = vshrl.u32 %v288, 7
    %v290 = vsub.s32 0, %v289
    %v291 = vrot.slane %v130, %v290
    %v293 = vadd.f32 %v284, %v291
    %v294 = vld [vmem:[%s5] sm:$0x1]
    %v295 = vld [vmem:[%s6] sm:$0x1]
    %v296 = vrot.slane %v293, 4
    %v297 = vadd.f32 %v293, %v296
    %v298 = vrot.slane %v297, 2
    %v299 = vadd.f32 %v297, %v298
    %v300 = vrot.slane %v299, 1
    %v301 = vadd.f32 %v299, %v300
    %v302 = vrcp.pop 8.0
    %v303 = vmul.f32 %v301, %v302
    %v304 = vsub.f32 %v293, %v303
    %v305 = vmul.f32 %v304, %v304
    %v306 = vrot.slane %v305, 4
    %v307 = vadd.f32 %v305, %v306
    %v308 = vrot.slane %v307, 2
    %v309 = vadd.f32 %v307, %v308
    %v310 = vrot.slane %v309, 1
    %v311 = vadd.f32 %v309, %v310
    %v312 = vmul.f32 %v311, %v302
    %v313 = vadd.f32 %v312, 1e-05
    %v314 = vrsqrt.pop %v313
    %v315 = vmul.f32 %v304, %v314
    %v317 = vlaneseq
    %v318 = vshrl.u32 %v317, 7
    %v319 = vsub.s32 0, %v318
    %v320 = vrot.slane %v294, %v319
    %v322 = vmul.f32 %v315, %v320
    %v324 = vlaneseq
    %v325 = vshrl.u32 %v324, 7
    %v326 = vsub.s32 0, %v325
    %v327 = vrot.slane %v295, %v326
    %v329 = vadd.f32 %v322, %v327
    %vm330 = vcmp.gt.f32.partialorder %v329, 0.0
    %v331 = vmul.f32 %v329, 0.2
    %v332 = vsel %vm330, %v329, %v331
    %v333 = vld [vmem:[#allocation10] sm:$0xff]
    %v334 = vld [vmem:[#allocation10 + $0x8] sm:$0xff]
    %v335 = vld [vmem:[#allocation10 + $0x10] sm:$0xff]
    %v336 = vld [vmem:[#allocation10 + $0x18] sm:$0xff]
    %v337 = vld [vmem:[#allocation10 + $0x20] sm:$0xff]
    %v338 = vld [vmem:[#allocation10 + $0x28] sm:$0xff]
    %v339 = vld [vmem:[#allocation10 + $0x30] sm:$0xff]
    %v340 = vld [vmem:[#allocation10 + $0x38] sm:$0xff]
    %v341 = vld [vmem:[#allocation10 + $0x40] sm:$0xff]
    %v342 = vld [vmem:[#allocation10 + $0x48] sm:$0xff]
    %v343 = vld [vmem:[#allocation10 + $0x50] sm:$0xff]
    %v344 = vld [vmem:[#allocation10 + $0x58] sm:$0xff]
    %v345 = vld [vmem:[#allocation10 + $0x60] sm:$0xff]
    %v346 = vld [vmem:[#allocation10 + $0x68] sm:$0xff]
    %v347 = vld [vmem:[#allocation10 + $0x70] sm:$0xff]
    %v348 = vld [vmem:[#allocation10 + $0x78] sm:$0xff]
    %v349 = vld [vmem:[%s8] sm:$0x1]
    %v351 = vlaneseq
    %v352 = vshrl.u32 %v351, 7
    %v353 = vsub.s32 0, %v352
    %v354 = vrot.slane %v349, %v353
    %356 = vmatprep.subr.mxu0 0.0
    %357 = vmatpush1.msra.mxu0 %v333
    %358 = vmatprep.subr.mxu0 0.0
    %359 = vmatpush1.msra.mxu0 %v334
    %360 = vmatprep.subr.mxu0 0.0
    %361 = vmatpush1.msra.mxu0 %v335
    %362 = vmatprep.subr.mxu0 0.0
    %363 = vmatpush1.msra.mxu0 %v336
    %364 = vmatprep.subr.mxu0 0.0
    %365 = vmatpush1.msra.mxu0 %v337
    %366 = vmatprep.subr.mxu0 0.0
    %367 = vmatpush1.msra.mxu0 %v338
    %368 = vmatprep.subr.mxu0 0.0
    %369 = vmatpush1.msra.mxu0 %v339
    %370 = vmatprep.subr.mxu0 0.0
    %371 = vmatpush1.msra.mxu0 %v340
    %372 = vmatprep.subr.mxu0 0.0
    %373 = vmatpush1.msra.mxu0 %v341
    %374 = vmatprep.subr.mxu0 0.0
    %375 = vmatpush1.msra.mxu0 %v342
    %376 = vmatprep.subr.mxu0 0.0
    %377 = vmatpush1.msra.mxu0 %v343
    %378 = vmatprep.subr.mxu0 0.0
    %379 = vmatpush1.msra.mxu0 %v344
    %380 = vmatprep.subr.mxu0 0.0
    %381 = vmatpush1.msra.mxu0 %v345
    %382 = vmatprep.subr.mxu0 0.0
    %383 = vmatpush1.msra.mxu0 %v346
    %384 = vmatprep.subr.mxu0 0.0
    %385 = vmatpush1.msra.mxu0 %v347
    %386 = vmatprep.subr.mxu0 0.0
    %387 = vmatpush1.msra.mxu0 %v348
    %388 = vmatprep.subr.mxu0 0.0
    %389 = vmatpush1.msra.mxu0 0.0
    %390 = vmatprep.subr.mxu0 0.0
    %391 = vmatpush1.msra.mxu0 0.0
    %392 = vmatprep.subr.mxu0 0.0
    %393 = vmatpush1.msra.mxu0 0.0
    %394 = vmatprep.subr.mxu0 0.0
    %395 = vmatpush1.msra.mxu0 0.0
    %396 = vmatprep.subr.mxu0 0.0
    %397 = vmatpush1.msra.mxu0 0.0
    %398 = vmatprep.subr.mxu0 0.0
    %399 = vmatpush1.msra.mxu0 0.0
    %400 = vmatprep.subr.mxu0 0.0
    %401 = vmatpush1.msra.mxu0 0.0
    %402 = vmatprep.subr.mxu0 0.0
    %403 = vmatpush1.msra.mxu0 0.0
    %404 = vmatprep.subr.mxu0 0.0
    %405 = vmatpush1.msra.mxu0 0.0
    %406 = vmatprep.subr.mxu0 0.0
    %407 = vmatpush1.msra.mxu0 0.0
    %408 = vmatprep.subr.mxu0 0.0
    %409 = vmatpush1.msra.mxu0 0.0
    %410 = vmatprep.subr.mxu0 0.0
    %411 = vmatpush1.msra.mxu0 0.0
    %412 = vmatprep.subr.mxu0 0.0
    %413 = vmatpush1.msra.mxu0 0.0
    %414 = vmatprep.subr.mxu0 0.0
    %415 = vmatpush1.msra.mxu0 0.0
    %416 = vmatprep.subr.mxu0 0.0
    %417 = vmatpush1.msra.mxu0 0.0
    %418 = vmatprep.subr.mxu0 0.0
    %419 = vmatpush1.msra.mxu0 0.0
    %420 = vmatprep.mubr.f32.mxu0 0.0
    %421 = vmatmul.mubr.f32.gmra.mrb[0].mxu0 %v332
    %v422 = vpop.f32.mrb[0].mxu0
    %v423 = vadd.f32 %v354, %v422
    %v424 = vpop.f32.mrb[0].mxu0
    %425 = vdwg.mxu0
    %v426 = vld [vmem:[%s9] sm:$0x1]
    %v427 = vld [vmem:[%s10] sm:$0x1]
    %v428 = vrot.slane %v423, 4
    %v429 = vadd.f32 %v423, %v428
    %v430 = vrot.slane %v429, 2
    %v431 = vadd.f32 %v429, %v430
    %v432 = vrot.slane %v431, 1
    %v433 = vadd.f32 %v431, %v432
    %v434 = vmul.f32 %v433, %v302
    %v435 = vsub.f32 %v423, %v434
    %v436 = vmul.f32 %v435, %v435
    %v437 = vrot.slane %v436, 4
    %v438 = vadd.f32 %v436, %v437
    %v439 = vrot.slane %v438, 2
    %v440 = vadd.f32 %v438, %v439
    %v441 = vrot.slane %v440, 1
    %v442 = vadd.f32 %v440, %v441
    %v443 = vmul.f32 %v442, %v302
    %v444 = vadd.f32 %v443, 1e-05
    %v445 = vrsqrt.pop %v444
    %v446 = vmul.f32 %v435, %v445
    %v448 = vlaneseq
    %v449 = vshrl.u32 %v448, 7
    %v450 = vsub.s32 0, %v449
    %v451 = vrot.slane %v426, %v450
    %v453 = vmul.f32 %v446, %v451
    %v455 = vlaneseq
    %v456 = vshrl.u32 %v455, 7
    %v457 = vsub.s32 0, %v456
    %v458 = vrot.slane %v427, %v457
    %v460 = vadd.f32 %v453, %v458
    %vm461 = vcmp.gt.f32.partialorder %v460, 0.0
    %v462 = vmul.f32 %v460, 0.2
    %v463 = vsel %vm461, %v460, %v462
    %v464 = vld [vmem:[#allocation11] sm:$0xff]
    %v465 = vld [vmem:[#allocation11 + $0x8] sm:$0xff]
    %v466 = vld [vmem:[#allocation11 + $0x10] sm:$0xff]
    %v467 = vld [vmem:[#allocation11 + $0x18] sm:$0xff]
    %v468 = vld [vmem:[#allocation11 + $0x20] sm:$0xff]
    %v469 = vld [vmem:[#allocation11 + $0x28] sm:$0xff]
    %v470 = vld [vmem:[#allocation11 + $0x30] sm:$0xff]
    %v471 = vld [vmem:[#allocation11 + $0x38] sm:$0xff]
    %v472 = vld [vmem:[#allocation11 + $0x40] sm:$0xff]
    %v473 = vld [vmem:[#allocation11 + $0x48] sm:$0xff]
    %v474 = vld [vmem:[#allocation11 + $0x50] sm:$0xff]
    %v475 = vld [vmem:[#allocation11 + $0x58] sm:$0xff]
    %v476 = vld [vmem:[#allocation11 + $0x60] sm:$0xff]
    %v477 = vld [vmem:[#allocation11 + $0x68] sm:$0xff]
    %v478 = vld [vmem:[#allocation11 + $0x70] sm:$0xff]
    %v479 = vld [vmem:[#allocation11 + $0x78] sm:$0xff]
    %v480 = vld [vmem:[%s12] sm:$0x1]
    %v482 = vlaneseq
    %v483 = vshrl.u32 %v482, 7
    %v484 = vsub.s32 0, %v483
    %v485 = vrot.slane %v480, %v484
    %487 = vmatprep.subr.mxu0 0.0
    %488 = vmatpush1.msra.mxu0 %v464
    %489 = vmatprep.subr.mxu0 0.0
    %490 = vmatpush1.msra.mxu0 %v465
    %491 = vmatprep.subr.mxu0 0.0
    %492 = vmatpush1.msra.mxu0 %v466
    %493 = vmatprep.subr.mxu0 0.0
    %494 = vmatpush1.msra.mxu0 %v467
    %495 = vmatprep.subr.mxu0 0.0
    %496 = vmatpush1.msra.mxu0 %v468
    %497 = vmatprep.subr.mxu0 0.0
    %498 = vmatpush1.msra.mxu0 %v469
    %499 = vmatprep.subr.mxu0 0.0
    %500 = vmatpush1.msra.mxu0 %v470
    %501 = vmatprep.subr.mxu0 0.0
    %502 = vmatpush1.msra.mxu0 %v471
    %503 = vmatprep.subr.mxu0 0.0
    %504 = vmatpush1.msra.mxu0 %v472
    %505 = vmatprep.subr.mxu0 0.0
    %506 = vmatpush1.msra.mxu0 %v473
    %507 = vmatprep.subr.mxu0 0.0
    %508 = vmatpush1.msra.mxu0 %v474
    %509 = vmatprep.subr.mxu0 0.0
    %510 = vmatpush1.msra.mxu0 %v475
    %511 = vmatprep.subr.mxu0 0.0
    %512 = vmatpush1.msra.mxu0 %v476
    %513 = vmatprep.subr.mxu0 0.0
    %514 = vmatpush1.msra.mxu0 %v477
    %515 = vmatprep.subr.mxu0 0.0
    %516 = vmatpush1.msra.mxu0 %v478
    %517 = vmatprep.subr.mxu0 0.0
    %518 = vmatpush1.msra.mxu0 %v479
    %519 = vmatprep.subr.mxu0 0.0
    %520 = vmatpush1.msra.mxu0 0.0
    %521 = vmatprep.subr.mxu0 0.0
    %522 = vmatpush1.msra.mxu0 0.0
    %523 = vmatprep.subr.mxu0 0.0
    %524 = vmatpush1.msra.mxu0 0.0
    %525 = vmatprep.subr.mxu0 0.0
    %526 = vmatpush1.msra.mxu0 0.0
    %527 = vmatprep.subr.mxu0 0.0
    %528 = vmatpush1.msra.mxu0 0.0
    %529 = vmatprep.subr.mxu0 0.0
    %530 = vmatpush1.msra.mxu0 0.0
    %531 = vmatprep.subr.mxu0 0.0
    %532 = vmatpush1.msra.mxu0 0.0
    %533 = vmatprep.subr.mxu0 0.0
    %534 = vmatpush1.msra.mxu0 0.0
    %535 = vmatprep.subr.mxu0 0.0
    %536 = vmatpush1.msra.mxu0 0.0
    %537 = vmatprep.subr.mxu0 0.0
    %538 = vmatpush1.msra.mxu0 0.0
    %539 = vmatprep.subr.mxu0 0.0
    %540 = vmatpush1.msra.mxu0 0.0
    %541 = vmatprep.subr.mxu0 0.0
    %542 = vmatpush1.msra.mxu0 0.0
    %543 = vmatprep.subr.mxu0 0.0
    %544 = vmatpush1.msra.mxu0 0.0
    %545 = vmatprep.subr.mxu0 0.0
    %546 = vmatpush1.msra.mxu0 0.0
    %547 = vmatprep.subr.mxu0 0.0
    %548 = vmatpush1.msra.mxu0 0.0
    %549 = vmatprep.subr.mxu0 0.0
    %550 = vmatpush1.msra.mxu0 0.0
    %551 = vmatprep.mubr.f32.mxu0 0.0
    %552 = vmatmul.mubr.f32.gmra.mrb[0].mxu0 %v463
    %v553 = vpop.f32.mrb[0].mxu0
    %v554 = vadd.f32 %v485, %v553
    %v555 = vpop.f32.mrb[0].mxu0
    %556 = vdwg.mxu0
    %vm557 = vcmp.gt.f32.partialorder %v554, 0.0
    %v558 = vmul.f32 %v554, 0.2
    %v559 = vsel %vm557, %v554, %v558
    %560 = vst [vmem:[#allocation13] sm:$0xff] %v559
    // Predicated region
    $region78: #{tpu_custom_call.1} parent=1 // pred_check
      _
    $region79: #{tpu_custom_call.1} parent=1 // pred_check_branch
      %562 = sbr.rel (0) target = $region81
    $region80: #{tpu_custom_call.1} parent=1 // pred_region
      %s564 = ssub.s32 128, 128
      %565 = vsyncadd [#allocation4], %s564
      %s567 = sshll.u32 [#allocation13], 4
      %s568 = int_to_ptr.vmem [resolvable:$true] %s567
      %570 = dma.vmem_to_hbm [thread:$0]  %s568, 128, %s13, [#allocation4]
    $region81: #{tpu_custom_call.1} parent=1 // pred_fallthru
      _
    // Predicated region
    $region82: #{tpu_custom_call.1} parent=1 // pred_check
      _
    $region83: #{tpu_custom_call.1} parent=1 // pred_check_branch
      %572 = sbr.rel (0) target = $region85
    $region84: #{tpu_custom_call.1} parent=1 // pred_region
      %573 = dma.done [#allocation4], 128
    $region85: #{tpu_custom_call.1} parent=1 // pred_fallthru
      _
    %574 = vsyncpa [#allocation3], 1
    %575 = vsyncpa [#allocation6], 1
    %576 = vsyncpa [#allocation9], 1
    %577 = vsyncpa [#allocation12], 1
    %578 = vsyncpa [#allocation4], 1

</llo_original>
